<compile_context>
chip_gen: v5e
topology: v5e:2x2
jax: 0.10.0
libtpu: 0.0.40
codegen_flags: <defaults>
</compile_context>

<pallas_src>
import jax
import jax.numpy as jnp
from jax import lax
from jax.experimental import pallas as pl
from jax.experimental.pallas import tpu as pltpu


def _round_up(x: int, m: int) -> int:
    return ((x + m - 1) // m) * m


# ---------------------------------------------------------------------------
# Kernel 1: sum of squares of v (||v||_F^2), tiled reduction with a resident
# (1, 1) accumulator output.
# ---------------------------------------------------------------------------
def _sumsq_kernel(v_ref, ssq_ref):
    @pl.when((pl.program_id(0) == 0) & (pl.program_id(1) == 0))
    def _():
        ssq_ref[...] = jnp.zeros_like(ssq_ref)

    vt = v_ref[...].astype(jnp.float32)
    ssq_ref[...] += jnp.sum(vt * vt, keepdims=True)


def _frobenius_sumsq(v_p, to, tk):
    out_p, in_p = v_p.shape
    return pl.pallas_call(
        _sumsq_kernel,
        out_shape=jax.ShapeDtypeStruct((1, 1), jnp.float32),
        grid=(out_p // to, in_p // tk),
        in_specs=[pl.BlockSpec((to, tk), lambda i, k: (i, k))],
        out_specs=pl.BlockSpec((1, 1), lambda i, k: (0, 0)),
        compiler_params=pltpu.CompilerParams(
            dimension_semantics=("arbitrary", "arbitrary")),
    )(v_p)


# ---------------------------------------------------------------------------
# Kernel 2: y = scale * (x @ v^T) + b, tiled over (B, Out, In).
# ---------------------------------------------------------------------------
def _wn_linear_kernel(scale_ref, x_ref, v_ref, b_ref, o_ref, acc_ref):
    k = pl.program_id(2)

    @pl.when(k == 0)
    def _():
        acc_ref[...] = jnp.zeros_like(acc_ref)

    # x: (tb, tk), v: (to, tk); contract the shared In dim directly on the MXU
    # (no in-kernel transpose, no per-element weight rescale, native dtypes).
    acc_ref[...] += lax.dot_general(
        x_ref[...], v_ref[...],
        dimension_numbers=(((1,), (1,)), ((), ())),
        preferred_element_type=jnp.float32)

    @pl.when(k == pl.num_programs(2) - 1)
    def _():
        scale = scale_ref[0, 0]                                   # SMEM scalar
        y = acc_ref[...] * scale + b_ref[...].astype(jnp.float32)  # fused scale+bias
        o_ref[...] = y.astype(o_ref.dtype)


# ---------------------------------------------------------------------------
# Wrapper: WeightNorm(nn.Linear) forward.
# ---------------------------------------------------------------------------
def weightnorm_linear(x, v, g, b, *, tb=256, to=512, tk=512):
    """x: (B, In), v: (Out, In), g: scalar / (1,1), b: (1, Out) -> (B, Out)."""
    B, In = x.shape
    Out, In_v = v.shape
    assert In_v == In
    assert b.shape == (1, Out)

    # Tile sizes: sublane dim multiple of 8, lane dims multiple of 128.
    tb_ = min(tb, _round_up(B, 8))
    tk_ = min(tk, _round_up(In, 128))
    to_ = min(to, _round_up(Out, 128))
    B_p, In_p, Out_p = _round_up(B, tb_), _round_up(In, tk_), _round_up(Out, to_)

    x_p = x if (B_p, In_p) == (B, In) else jnp.pad(x, ((0, B_p - B), (0, In_p - In)))
    v_p = v if (Out_p, In_p) == (Out, In) else jnp.pad(v, ((0, Out_p - Out), (0, In_p - In)))
    b_p = b if Out_p == Out else jnp.pad(b, ((0, 0), (0, Out_p - Out)))

    # ||v||_F^2 via the Pallas reduction kernel (zero padding contributes 0),
    # then the scalar scale = g / ||v||_F (trivial scalar glue in the wrapper).
    ssq = _frobenius_sumsq(v_p, to_, tk_)
    scale = (jnp.asarray(g, jnp.float32).reshape(()) *
             lax.rsqrt(ssq[0, 0])).reshape(1, 1)

    grid = (B_p // tb_, Out_p // to_, In_p // tk_)
    y_p = pl.pallas_call(
        _wn_linear_kernel,
        out_shape=jax.ShapeDtypeStruct((B_p, Out_p), x.dtype),
        grid=grid,
        in_specs=[
            pl.BlockSpec(memory_space=pltpu.MemorySpace.SMEM),   # scale (1, 1)
            pl.BlockSpec((tb_, tk_), lambda i, j, k: (i, k)),     # x
            pl.BlockSpec((to_, tk_), lambda i, j, k: (j, k)),     # v
            pl.BlockSpec((1, to_), lambda i, j, k: (0, j)),       # bias
        ],
        out_specs=pl.BlockSpec((tb_, to_), lambda i, j, k: (i, j)),
        scratch_shapes=[pltpu.VMEM((tb_, to_), jnp.float32)],
        compiler_params=pltpu.CompilerParams(
            dimension_semantics=("parallel", "parallel", "arbitrary"),
            vmem_limit_bytes=32 * 1024 * 1024),
    )(scale, x_p, v_p, b_p)

    return y_p[:B, :Out]


if __name__ == "__main__":
    key = jax.random.PRNGKey(0)
    k_x, k_w, k_b = jax.random.split(key, 3)

    # Small shapes consistent with WeightNorm(nn.Linear(32, 32), ["weight"]).
    B, In, Out = 8, 32, 32

    # Deterministic init (mimics nn.Linear uniform(-1/sqrt(In), 1/sqrt(In))).
    bound = 1.0 / (In ** 0.5)
    w0 = jax.random.uniform(k_w, (Out, In), jnp.float32, -bound, bound)
    bias = jax.random.uniform(k_b, (1, Out), jnp.float32, -bound, bound)

    # WeightNorm._reset(): g = ||w0||_F, v = w0 / g
    g_scalar = jnp.sqrt(jnp.sum(w0 * w0))
    v = w0 / g_scalar
    g = g_scalar.reshape(1, 1)

    x = jax.random.normal(k_x, (B, In), jnp.float32)

    y = weightnorm_linear(x, v, g, bias)
    y = jax.block_until_ready(y)

    # Pure-JAX reference of the same forward semantics.
    w_ref = v * (g_scalar / jnp.sqrt(jnp.sum(v * v)))
    y_ref = x @ w_ref.T + bias
    assert y.shape == (B, Out)
    assert jnp.allclose(y, y_ref, atol=1e-4, rtol=1e-4), float(jnp.max(jnp.abs(y - y_ref)))

    print("KERNEL_OK")
</pallas_src>

<mosaic_0001>
module attributes {stable_mosaic.version = 11 : i64} {
  func.func @_sumsq_kernel(%arg0: i32, %arg1: i32, %arg2: memref<128x128xf32, #tpu.memory_space<vmem>>, %arg3: memref<1x1xf32, #tpu.memory_space<vmem>>) attributes {dimension_semantics = [#tpu.dimension_semantics<arbitrary>, #tpu.dimension_semantics<arbitrary>], iteration_bounds = array<i64: 1, 1>, scalar_prefetch = 0 : i64, scratch_operands = 0 : i64, tpu.core_type = #tpu.core_type<tc>, window_params = [{transform_indices = @transform_0, window_bounds = array<i64: 128, 128>}, {pipeline_mode = #tpu.pipeline_mode<synchronous>, transform_indices = @transform_1, window_bounds = array<i64: 1, 1>}]} {
    %c0_i32 = arith.constant 0 : i32
    %0 = arith.cmpi eq, %arg0, %c0_i32 : i32
    %c0_i32_0 = arith.constant 0 : i32
    %1 = arith.cmpi eq, %arg1, %c0_i32_0 : i32
    %2 = arith.andi %0, %1 : i1
    %3 = arith.extui %2 : i1 to i32
    %c0_i32_1 = arith.constant 0 : i32
    %4 = arith.cmpi ne, %3, %c0_i32_1 : i32
    scf.if %4 {
      %cst_7 = arith.constant 0.000000e+00 : f32
      %15 = vector.broadcast %cst_7 : f32 to vector<1x1xf32>
      %c0_8 = arith.constant 0 : index
      %c0_9 = arith.constant 0 : index
      %16 = vector.load %arg3[%c0_8, %c0_9] : memref<1x1xf32, #tpu.memory_space<vmem>>, vector<1x1xf32>
      tpu.vector_store %arg3[%c0_8, %c0_9], %15 {strides = array<i32>} : memref<1x1xf32, #tpu.memory_space<vmem>>, vector<1x1xf32>,
    } else {
    }
    %c0 = arith.constant 0 : index
    %c0_2 = arith.constant 0 : index
    %5 = vector.load %arg2[%c0, %c0_2] : memref<128x128xf32, #tpu.memory_space<vmem>>, vector<128x128xf32>
    %c0_3 = arith.constant 0 : index
    %c0_4 = arith.constant 0 : index
    %6 = vector.load %arg3[%c0_3, %c0_4] : memref<1x1xf32, #tpu.memory_space<vmem>>, vector<1x1xf32>
    %7 = arith.mulf %5, %5 : vector<128x128xf32>
    %8 = vector.shape_cast %7 : vector<128x128xf32> to vector<1x128x128xf32>
    %cst = arith.constant dense<0.000000e+00> : vector<1xf32>
    %9 = vector.multi_reduction <add>, %8, %cst [1, 2] : vector<1x128x128xf32> to vector<1xf32>
    %10 = vector.shape_cast %9 : vector<1xf32> to vector<1x1x1xf32>
    %11 = vector.extract %10[0, 0, 0] : f32 from vector<1x1x1xf32>
    %12 = vector.broadcast %11 : f32 to vector<1x1xf32>
    %13 = arith.addf %6, %12 : vector<1x1xf32>
    %c0_5 = arith.constant 0 : index
    %c0_6 = arith.constant 0 : index
    %14 = vector.load %arg3[%c0_5, %c0_6] : memref<1x1xf32, #tpu.memory_space<vmem>>, vector<1x1xf32>
    tpu.vector_store %arg3[%c0_5, %c0_6], %13 {strides = array<i32>} : memref<1x1xf32, #tpu.memory_space<vmem>>, vector<1x1xf32>,
    return
  }
  func.func @transform_0(%arg0: i32, %arg1: i32) -> (i32, i32) {
    %c0_i32 = arith.constant 0 : i32
    return %arg0, %arg1 : i32, i32
  }
  func.func @transform_1(%arg0: i32, %arg1: i32) -> (i32, i32) {
    %c0_i32 = arith.constant 0 : i32
    %c0_i32_0 = arith.constant 0 : i32
    %c0_i32_1 = arith.constant 0 : i32
    return %c0_i32, %c0_i32_0 : i32, i32
  }
}

</mosaic_0001>

<llo_original>
// kernel: tpu_custom_call.1
$region0: #{tpu_custom_call.1}
  #allocation0 [shape = 'u32[]', space=smem, size = 0x4, offset = 0x4, fixed_abs, tag = 'smem constant byte address 0x4 - core index']
  #allocation1 [shape = 'u32[72,128]{1,0:T(1,128)}', space=vmem, size = 0x9000, scoped, tag = 'internal scratch']
  %s0 = inlined_call_operand.hbm [shape: f32[128,128], index: 0, kind: input, shape index: {}]
  %s1 = inlined_call_operand.hbm [shape: f32[1,1], index: 1, kind: output, shape index: {}]
  %s2 = sld [smem:[#allocation0]]
  $region22: #{tpu_custom_call.1} parent=0
    _
  %s4 = ssub.s32 1, %s2
  %s5 = scalar_select 0, %s4, %s2
  $region1: #{tpu_custom_call.1} parent=0
    #allocation2 [shape = 'u8[65536]{0}', space=vmem, size = 0x10000, scoped, tag = 'input window, operand 0, single buffered']
    #allocation3 [shape = 's32[1]{0}', space=sflag, size = 0x4, scoped, tag = 'scoped memory for tpu_custom_call.1']
    #allocation4 [shape = 's32[1]{0}', space=sflag, size = 0x4, scoped, tag = 'scoped memory for tpu_custom_call.1']
    #allocation5 [shape = 'u8[512]{0}', space=vmem, size = 0x400, scoped, tag = 'output window, operand 0, single buffered']
    %6 = vsyncpa [#allocation3], 0
    %7 = vsyncpa [#allocation4], 0
    // Predicated region
    $region2: #{tpu_custom_call.1} parent=1 // pred_check
      _
    $region3: #{tpu_custom_call.1} parent=1 // pred_check_branch
      %9 = sbr.rel (0) target = $region5
    $region4: #{tpu_custom_call.1} parent=1 // pred_region
      %11 = vsyncadd [#allocation3], 0
      %s12 = sshll.u32 %s0, 4
      %s13 = int_to_ptr.hbm [resolvable:$true] %s12
      %s14 = sshll.u32 [#allocation2], 4
      %s15 = int_to_ptr.vmem [resolvable:$true] %s14
      %20 = dma.hbm_to_vmem [thread:$0]  %s13, 2048, %s15, [#allocation3], 128, 128, 8
    $region5: #{tpu_custom_call.1} parent=1 // pred_fallthru
      _
    // Predicated region
    $region6: #{tpu_custom_call.1} parent=1 // pred_check
      _
    $region7: #{tpu_custom_call.1} parent=1 // pred_check_branch
      %22 = sbr.rel (0) target = $region9
    $region8: #{tpu_custom_call.1} parent=1 // pred_region
      %24 = dma.done [#allocation3], 2048
    $region9: #{tpu_custom_call.1} parent=1 // pred_fallthru
      _
    %p25 = scmp.eq.s32.totalorder 0, 0
    %p26 = scmp.eq.s32.totalorder 0, 0
    %p27 = pnand %p25, %p26
    %p28 = pneg %p27
    // Predicated region
    $region10: #{tpu_custom_call.1} parent=1 // pred_check
      _
    $region11: #{tpu_custom_call.1} parent=1 // pred_check_branch
      %30 = sbr.rel (%p27) target = $region13
    $region12: #{tpu_custom_call.1} parent=1 // pred_region
      %vm31 = vcmask 0
      %32 = vst.msk [vmem:[#allocation5] sm:$0x1] %vm31, 0.0
    $region13: #{tpu_custom_call.1} parent=1 // pred_fallthru
      _
    %v33 = vld [vmem:[#allocation2] sm:$0xff]
    %v34 = vld [vmem:[#allocation2 + $0x8] sm:$0xff]
    %v35 = vld [vmem:[#allocation2 + $0x10] sm:$0xff]
    %v36 = vld [vmem:[#allocation2 + $0x18] sm:$0xff]
    %v37 = vld [vmem:[#allocation2 + $0x20] sm:$0xff]
    %v38 = vld [vmem:[#allocation2 + $0x28] sm:$0xff]
    %v39 = vld [vmem:[#allocation2 + $0x30] sm:$0xff]
    %v40 = vld [vmem:[#allocation2 + $0x38] sm:$0xff]
    %v41 = vld [vmem:[#allocation2 + $0x40] sm:$0xff]
    %v42 = vld [vmem:[#allocation2 + $0x48] sm:$0xff]
    %v43 = vld [vmem:[#allocation2 + $0x50] sm:$0xff]
    %v44 = vld [vmem:[#allocation2 + $0x58] sm:$0xff]
    %v45 = vld [vmem:[#allocation2 + $0x60] sm:$0xff]
    %v46 = vld [vmem:[#allocation2 + $0x68] sm:$0xff]
    %v47 = vld [vmem:[#allocation2 + $0x70] sm:$0xff]
    %v48 = vld [vmem:[#allocation2 + $0x78] sm:$0xff]
    %v49 = vld [vmem:[#allocation5] sm:$0x1]
    %v50 = vmul.f32 %v33, %v33
    %v51 = vmul.f32 %v34, %v34
    %v52 = vmul.f32 %v35, %v35
    %v53 = vmul.f32 %v36, %v36
    %v54 = vmul.f32 %v37, %v37
    %v55 = vmul.f32 %v38, %v38
    %v56 = vmul.f32 %v39, %v39
    %v57 = vmul.f32 %v40, %v40
    %v58 = vmul.f32 %v41, %v41
    %v59 = vmul.f32 %v42, %v42
    %v60 = vmul.f32 %v43, %v43
    %v61 = vmul.f32 %v44, %v44
    %v62 = vmul.f32 %v45, %v45
    %v63 = vmul.f32 %v46, %v46
    %v64 = vmul.f32 %v47, %v47
    %v65 = vmul.f32 %v48, %v48
    %v66 = vadd.f32 %v50, %v51
    %v67 = vadd.f32 %v66, %v52
    %v68 = vadd.f32 %v67, %v53
    %v69 = vadd.f32 %v68, %v54
    %v70 = vadd.f32 %v69, %v55
    %v71 = vadd.f32 %v70, %v56
    %v72 = vadd.f32 %v71, %v57
    %v73 = vadd.f32 %v72, %v58
    %v74 = vadd.f32 %v73, %v59
    %v75 = vadd.f32 %v74, %v60
    %v76 = vadd.f32 %v75, %v61
    %v77 = vadd.f32 %v76, %v62
    %v78 = vadd.f32 %v77, %v63
    %v79 = vadd.f32 %v78, %v64
    %v80 = vadd.f32 %v79, %v65
    %81 = vadd.xlane.f32.xlu0 %v80
    %v82 = vpop.xlane.xlu0 %81
    %v83 = vrot.slane %v82, 4
    %v84 = vadd.f32 %v82, %v83
    %v85 = vrot.slane %v84, 2
    %v86 = vadd.f32 %v84, %v85
    %v87 = vrot.slane %v86, 1
    %v88 = vadd.f32 %v86, %v87
    %s89 = vtos %v88
    %v90 = vstv %s89
    %v91 = vadd.f32 %v49, %v90
    %vm92 = vcmask 0
    %93 = vst.msk [vmem:[#allocation5] sm:$0x1] %vm92, %v91
    // Predicated region
    $region14: #{tpu_custom_call.1} parent=1 // pred_check
      _
    $region15: #{tpu_custom_call.1} parent=1 // pred_check_branch
      %95 = sbr.rel (0) target = $region17
    $region16: #{tpu_custom_call.1} parent=1 // pred_region
      %97 = vsyncadd [#allocation4], 0
      %s99 = sshll.u32 [#allocation5], 4
      %s100 = int_to_ptr.vmem [resolvable:$true] %s99
      %s101 = sshll.u32 %s1, 4
      %s102 = int_to_ptr.hbm [resolvable:$true] %s101
      %104 = dma.vmem_to_hbm [thread:$0]  %s100, 16, %s102, [#allocation4]
    $region17: #{tpu_custom_call.1} parent=1 // pred_fallthru
      _
    // Predicated region
    $region18: #{tpu_custom_call.1} parent=1 // pred_check
      _
    $region19: #{tpu_custom_call.1} parent=1 // pred_check_branch
      %106 = sbr.rel (0) target = $region21
    $region20: #{tpu_custom_call.1} parent=1 // pred_region
      %108 = dma.done [#allocation4], 16
    $region21: #{tpu_custom_call.1} parent=1 // pred_fallthru
      _
    %109 = vsyncpa [#allocation3], 1
    %110 = vsyncpa [#allocation4], 1

</llo_original>
